<compile_context>
chip_gen: v7x
topology: tpu7x:2x2x1
jax: 0.10.0
libtpu: 0.0.40
codegen_flags: <defaults>
</compile_context>

<pallas_src>
import jax
import jax.numpy as jnp
from jax.experimental import pallas as pl
from jax.experimental.pallas import tpu as pltpu

EPS = 1e-6

# Packed output rows (lane axis = batch).
_ROW_P, _ROW_LOGG, _ROW_A, _ROW_MATCH, _ROW_ENT = 0, 1, 2, 3, 4   # sampling (5 rows)
_TROW_P, _TROW_A, _TROW_ENT = 0, 1, 2                             # testing  (3 rows)


def _make_kernel(testing: bool):
    """Kernel body with the static `testing` flag closed over."""

    def kernel(*refs):
        if testing:
            x_ref, w_ref, b_ref, out_ref = refs
        else:
            x_ref, u_ref, w_ref, b_ref, out_ref = refs

        f32 = jnp.float32
        x = x_ref[...]                                            # (TB, E)
        # Linear head on the MXU (kernel is HBM-bound; MXU width is irrelevant).
        z = jnp.dot(x, w_ref[...], preferred_element_type=f32)    # (TB, 1)
        z = z + b_ref[0, 0]                                       # bias (SMEM scalar)

        # Relayout ONLY the tiny logit vector to lane-dense (1, TB): all
        # downstream EUP/VPU work then uses full vregs and the output stores
        # are unmasked full-lane stores.  This moves TB floats, not the input.
        zt = jnp.transpose(z)                                     # (1, TB)

        p = jnp.clip(1.0 / (1.0 + jnp.exp(-zt)), EPS, 1.0 - EPS)
        greedy = (p >= 0.5).astype(f32)
        logp = jnp.log(p)                                         # reused twice
        log1mp = jnp.log(1.0 - p)
        ent_row = -(p * logp + (1.0 - p) * log1mp)

        if testing:
            # a == greedy; log_g / match skipped (match is identically 1).
            out_ref[_TROW_P:_TROW_P + 1, :] = p
            out_ref[_TROW_A:_TROW_A + 1, :] = greedy
            out_ref[_TROW_ENT:_TROW_ENT + 1, :] = ent_row
        else:
            u = u_ref[...]                                        # (1, TB) U[0,1)
            a = (u < p).astype(f32)                               # Bernoulli(p)
            log_g = a * logp + (1.0 - a) * log1mp                 # exact: a in {0,1}
            match = (greedy == a).astype(f32)
            out_ref[_ROW_P:_ROW_P + 1, :] = p
            out_ref[_ROW_LOGG:_ROW_LOGG + 1, :] = log_g
            out_ref[_ROW_A:_ROW_A + 1, :] = a
            out_ref[_ROW_MATCH:_ROW_MATCH + 1, :] = match
            out_ref[_ROW_ENT:_ROW_ENT + 1, :] = ent_row

    return kernel


def term_policy_forward(params, thoughtvector, uniforms=None, *, testing=False,
                        block_b=2048):
    """Pallas forward of TermPolicy.

    Returns the same tuple as TermPolicy.forward(thoughtvector, testing):
      (response_probs (B,1) f32, log_g (B,1) f32 or None, a (B,1) uint8,
       entropy scalar f32, matches_greedy_count scalar int32, stochastic_draws=B).

    `uniforms`: pre-drawn U[0,1) of shape (B,) or (B,1); required when
    testing=False.
    """
    tv = thoughtvector
    if tv.dtype not in (jnp.bfloat16, jnp.float32):
        tv = tv.astype(jnp.float32)
    B, E = tv.shape
    w = params["w"].astype(tv.dtype)                              # (E, 1)
    b = params["b"].astype(jnp.float32).reshape(1, 1)             # SMEM scalar

    # Batch tile: large enough to amortize the ~0.35us per-grid-step overhead,
    # small enough that the double-buffered input tiles stay far below scoped
    # VMEM on v5e/v6e/v7x (block_b=2048, E=100, f32 -> ~0.8 MiB per tile).
    if B <= block_b:
        tb = B                        # single block; block dims == full array dims
        grid = (1,)
    else:
        if block_b % 128 != 0:
            raise ValueError("block_b must be a multiple of 128")
        tb = block_b
        grid = (pl.cdiv(B, tb),)      # ragged final block handled by Pallas masking

    n_rows = 3 if testing else 5
    kernel = _make_kernel(testing)

    x_spec = pl.BlockSpec((tb, E), lambda i: (i, 0))              # input read in place
    w_spec = pl.BlockSpec((E, 1), lambda i: (0, 0))
    b_spec = pl.BlockSpec(memory_space=pltpu.MemorySpace.SMEM)
    out_spec = pl.BlockSpec((n_rows, tb), lambda i: (0, i))       # lane-dense output

    if testing:
        in_specs = [x_spec, w_spec, b_spec]
        args = (tv, w, b)
    else:
        if uniforms is None:
            raise ValueError("uniforms (pre-drawn U[0,1), shape (B,1)) are required "
                             "when testing=False")
        # (B,1)->(1,B) is an order-preserving reshape of a tiny array; the batch
        # then rides the lane axis, matching the in-kernel layout of p.
        u_row = jnp.asarray(uniforms, jnp.float32).reshape(1, B)
        u_spec = pl.BlockSpec((1, tb), lambda i: (0, i))
        in_specs = [x_spec, u_spec, w_spec, b_spec]
        args = (tv, u_row, w, b)

    out = pl.pallas_call(
        kernel,
        out_shape=jax.ShapeDtypeStruct((n_rows, B), jnp.float32),
        grid=grid,
        in_specs=in_specs,
        out_specs=out_spec,
        compiler_params=pltpu.CompilerParams(
            dimension_semantics=("parallel",)),                   # v7x: both TCs
    )(*args)

    response_probs = out[_ROW_P].reshape(B, 1)
    entropy = jnp.sum(out[_TROW_ENT if testing else _ROW_ENT])
    if testing:
        log_g = None
        a = out[_TROW_A].reshape(B, 1).astype(jnp.uint8)
        matches_greedy_count = jnp.asarray(B, jnp.int32)          # greedy == greedy
    else:
        log_g = out[_ROW_LOGG].reshape(B, 1)
        a = out[_ROW_A].reshape(B, 1).astype(jnp.uint8)
        matches_greedy_count = jnp.sum(out[_ROW_MATCH]).astype(jnp.int32)
    return response_probs, log_g, a, entropy, matches_greedy_count, B


def init_params(key, emb=100):
    """Mirror nn.Linear(emb, 1) init; weight stored as (in, out)."""
    kw, kb = jax.random.split(key)
    bound = 1.0 / (emb ** 0.5)
    return {
        "w": jax.random.uniform(kw, (emb, 1), jnp.float32, -bound, bound),
        "b": jax.random.uniform(kb, (1, 1), jnp.float32, -bound, bound),
    }


if __name__ == "__main__":
    key = jax.random.PRNGKey(0)
    B, E = 16, 100                    # embedding_size default of the module
    k_par, k_x, k_u, k_x2, k_u2 = jax.random.split(key, 5)

    params = init_params(k_par, emb=E)
    tv = jax.random.normal(k_x, (B, E), jnp.float32)
    u = jax.random.uniform(k_u, (B, 1), jnp.float32)

    def ref_forward(tv_, u_, testing):
        z = jnp.dot(tv_, params["w"], precision=jax.lax.Precision.HIGHEST) + params["b"]
        p_ = jnp.clip(jax.nn.sigmoid(z), EPS, 1.0 - EPS)
        greedy = (p_ >= 0.5).astype(jnp.float32)
        a_ = greedy if testing else (u_ < p_).astype(jnp.float32)
        g = a_ * p_ + (1.0 - a_) * (1.0 - p_)
        log_g_ = None if testing else jnp.log(g)
        ent_ = -jnp.sum(p_ * jnp.log(p_) + (1.0 - p_) * jnp.log(1.0 - p_))
        matches_ = jnp.sum((greedy == a_).astype(jnp.int32))
        return p_, log_g_, a_, ent_, matches_

    # ---- sampling path (testing=False), single block ----
    p, log_g, a, ent, matches, draws = jax.block_until_ready(
        term_policy_forward(params, tv, u, testing=False))
    p_r, log_g_r, a_r, ent_r, matches_r = ref_forward(tv, u, False)
    assert p.shape == (B, 1) and log_g.shape == (B, 1) and a.shape == (B, 1)
    assert a.dtype == jnp.uint8
    assert bool(jnp.all((a == 0) | (a == 1)))
    assert bool(jnp.allclose(p, p_r, rtol=1e-5, atol=1e-5))
    assert bool(jnp.all(a.astype(jnp.float32) == a_r))
    assert bool(jnp.allclose(log_g, log_g_r, rtol=1e-4, atol=1e-5))
    assert bool(jnp.allclose(ent, ent_r, rtol=1e-4, atol=1e-4))
    assert int(matches) == int(matches_r)
    assert draws == B

    # ---- greedy path (testing=True) ----
    p_t, log_g_t, a_t, ent_t, matches_t, draws_t = jax.block_until_ready(
        term_policy_forward(params, tv, testing=True))
    assert log_g_t is None
    assert bool(jnp.all(a_t.astype(jnp.float32) == (p_r >= 0.5).astype(jnp.float32)))
    assert int(matches_t) == B and draws_t == B
    assert bool(jnp.allclose(ent_t, ent_r, rtol=1e-4, atol=1e-4))

    # ---- multi-block grid with ragged final tile (exercises tiling/pipelining) ----
    B2 = 300
    tv2 = jax.random.normal(k_x2, (B2, E), jnp.float32)
    u2 = jax.random.uniform(k_u2, (B2, 1), jnp.float32)
    p2, log_g2, a2, ent2, matches2, draws2 = jax.block_until_ready(
        term_policy_forward(params, tv2, u2, testing=False, block_b=128))
    p2_r, log_g2_r, a2_r, ent2_r, matches2_r = ref_forward(tv2, u2, False)
    assert bool(jnp.allclose(p2, p2_r, rtol=1e-5, atol=1e-5))
    assert bool(jnp.all(a2.astype(jnp.float32) == a2_r))
    assert bool(jnp.allclose(log_g2, log_g2_r, rtol=1e-4, atol=1e-5))
    assert bool(jnp.allclose(ent2, ent2_r, rtol=1e-4, atol=1e-4))
    assert int(matches2) == int(matches2_r)
    assert draws2 == B2

    print("KERNEL_OK")
</pallas_src>

<mosaic_0001>
module attributes {stable_mosaic.version = 11 : i64} {
  func.func @kernel(%arg0: i32, %arg1: memref<16x100xf32, #tpu.memory_space<vmem>>, %arg2: memref<1x16xf32, #tpu.memory_space<vmem>>, %arg3: memref<100x1xf32, #tpu.memory_space<vmem>>, %arg4: memref<1x1xf32, #tpu.memory_space<smem>>, %arg5: memref<5x16xf32, #tpu.memory_space<vmem>>) attributes {dimension_semantics = [#tpu.dimension_semantics<parallel>], iteration_bounds = array<i64: 1>, scalar_prefetch = 0 : i64, scratch_operands = 0 : i64, tpu.core_type = #tpu.core_type<tc>, window_params = [{transform_indices = @transform_0, window_bounds = array<i64: 16, 100>}, {transform_indices = @transform_1, window_bounds = array<i64: 1, 16>}, {pipeline_mode = #tpu.pipeline_mode<synchronous>, transform_indices = @transform_2, window_bounds = array<i64: 100, 1>}, {transform_indices = @transform_3, window_bounds = array<i64: 1, 1>}, {transform_indices = @transform_4, window_bounds = array<i64: 5, 16>}]} {
    %c0 = arith.constant 0 : index
    %c0_0 = arith.constant 0 : index
    %0 = vector.load %arg1[%c0, %c0_0] : memref<16x100xf32, #tpu.memory_space<vmem>>, vector<16x100xf32>
    %c0_1 = arith.constant 0 : index
    %c0_2 = arith.constant 0 : index
    %1 = vector.load %arg3[%c0_1, %c0_2] : memref<100x1xf32, #tpu.memory_space<vmem>>, vector<100x1xf32>
    %cst = arith.constant dense<0.000000e+00> : vector<16x1xf32>
    %2 = tpu.matmul %0, %1, %cst {dimension_numbers = #tpu.dot_dimension_numbers<[1], [0], [0], [1], [0, 0, 1, 1], [], []>} : vector<16x100xf32>, vector<100x1xf32>, vector<16x1xf32> -> vector<16x1xf32>
    %c0_3 = arith.constant 0 : index
    %c0_4 = arith.constant 0 : index
    %3 = memref.load %arg4[%c0_3, %c0_4] : memref<1x1xf32, #tpu.memory_space<smem>>
    %4 = vector.broadcast %3 : f32 to vector<16x1xf32>
    %5 = arith.addf %2, %4 : vector<16x1xf32>
    %6 = tpu.transpose %5, [1, 0] : vector<16x1xf32> -> vector<1x16xf32>
    %cst_5 = arith.constant 0.000000e+00 : f32
    %7 = vector.broadcast %cst_5 : f32 to vector<1x16xf32>
    %8 = arith.subf %7, %6 : vector<1x16xf32>
    %9 = math.exp %8 : vector<1x16xf32>
    %cst_6 = arith.constant 1.000000e+00 : f32
    %10 = vector.broadcast %cst_6 : f32 to vector<1x16xf32>
    %11 = arith.addf %10, %9 : vector<1x16xf32>
    %cst_7 = arith.constant 1.000000e+00 : f32
    %12 = vector.broadcast %cst_7 : f32 to vector<1x16xf32>
    %13 = arith.divf %12, %11 : vector<1x16xf32>
    %cst_8 = arith.constant 9.99999997E-7 : f32
    %cst_9 = arith.constant 0.999998986 : f32
    %14 = vector.broadcast %cst_8 : f32 to vector<1x16xf32>
    %15 = arith.maximumf %14, %13 : vector<1x16xf32>
    %16 = vector.broadcast %cst_9 : f32 to vector<1x16xf32>
    %17 = arith.minimumf %16, %15 : vector<1x16xf32>
    %cst_10 = arith.constant 5.000000e-01 : f32
    %18 = vector.broadcast %cst_10 : f32 to vector<1x16xf32>
    %19 = arith.cmpf oge, %17, %18 : vector<1x16xf32>
    %20 = arith.extui %19 : vector<1x16xi1> to vector<1x16xi32>
    %21 = arith.sitofp %20 : vector<1x16xi32> to vector<1x16xf32>
    %22 = math.log %17 : vector<1x16xf32>
    %cst_11 = arith.constant 1.000000e+00 : f32
    %23 = vector.broadcast %cst_11 : f32 to vector<1x16xf32>
    %24 = arith.subf %23, %17 : vector<1x16xf32>
    %25 = math.log %24 : vector<1x16xf32>
    %26 = arith.mulf %17, %22 : vector<1x16xf32>
    %cst_12 = arith.constant 1.000000e+00 : f32
    %27 = vector.broadcast %cst_12 : f32 to vector<1x16xf32>
    %28 = arith.subf %27, %17 : vector<1x16xf32>
    %29 = arith.mulf %28, %25 : vector<1x16xf32>
    %30 = arith.addf %26, %29 : vector<1x16xf32>
    %cst_13 = arith.constant 0.000000e+00 : f32
    %31 = vector.broadcast %cst_13 : f32 to vector<1x16xf32>
    %32 = arith.subf %31, %30 : vector<1x16xf32>
    %c0_14 = arith.constant 0 : index
    %c0_15 = arith.constant 0 : index
    %33 = vector.load %arg2[%c0_14, %c0_15] : memref<1x16xf32, #tpu.memory_space<vmem>>, vector<1x16xf32>
    %34 = arith.cmpf olt, %33, %17 : vector<1x16xf32>
    %35 = arith.extui %34 : vector<1x16xi1> to vector<1x16xi32>
    %36 = arith.sitofp %35 : vector<1x16xi32> to vector<1x16xf32>
    %37 = arith.mulf %36, %22 : vector<1x16xf32>
    %cst_16 = arith.constant 1.000000e+00 : f32
    %38 = vector.broadcast %cst_16 : f32 to vector<1x16xf32>
    %39 = arith.subf %38, %36 : vector<1x16xf32>
    %40 = arith.mulf %39, %25 : vector<1x16xf32>
    %41 = arith.addf %37, %40 : vector<1x16xf32>
    %42 = arith.cmpf oeq, %21, %36 : vector<1x16xf32>
    %43 = arith.extui %42 : vector<1x16xi1> to vector<1x16xi32>
    %44 = arith.sitofp %43 : vector<1x16xi32> to vector<1x16xf32>
    %c0_17 = arith.constant 0 : index
    %c0_18 = arith.constant 0 : index
    %45 = vector.load %arg5[%c0_17, %c0_18] : memref<5x16xf32, #tpu.memory_space<vmem>>, vector<1x16xf32>
    tpu.vector_store %arg5[%c0_17, %c0_18], %17 {strides = array<i32>} : memref<5x16xf32, #tpu.memory_space<vmem>>, vector<1x16xf32>,
    %c1 = arith.constant 1 : index
    %c0_19 = arith.constant 0 : index
    %46 = vector.load %arg5[%c1, %c0_19] : memref<5x16xf32, #tpu.memory_space<vmem>>, vector<1x16xf32>
    tpu.vector_store %arg5[%c1, %c0_19], %41 {strides = array<i32>} : memref<5x16xf32, #tpu.memory_space<vmem>>, vector<1x16xf32>,
    %c2 = arith.constant 2 : index
    %c0_20 = arith.constant 0 : index
    %47 = vector.load %arg5[%c2, %c0_20] : memref<5x16xf32, #tpu.memory_space<vmem>>, vector<1x16xf32>
    tpu.vector_store %arg5[%c2, %c0_20], %36 {strides = array<i32>} : memref<5x16xf32, #tpu.memory_space<vmem>>, vector<1x16xf32>,
    %c3 = arith.constant 3 : index
    %c0_21 = arith.constant 0 : index
    %48 = vector.load %arg5[%c3, %c0_21] : memref<5x16xf32, #tpu.memory_space<vmem>>, vector<1x16xf32>
    tpu.vector_store %arg5[%c3, %c0_21], %44 {strides = array<i32>} : memref<5x16xf32, #tpu.memory_space<vmem>>, vector<1x16xf32>,
    %c4 = arith.constant 4 : index
    %c0_22 = arith.constant 0 : index
    %49 = vector.load %arg5[%c4, %c0_22] : memref<5x16xf32, #tpu.memory_space<vmem>>, vector<1x16xf32>
    tpu.vector_store %arg5[%c4, %c0_22], %32 {strides = array<i32>} : memref<5x16xf32, #tpu.memory_space<vmem>>, vector<1x16xf32>,
    return
  }
  func.func @transform_0(%arg0: i32) -> (i32, i32) {
    %c0_i32 = arith.constant 0 : i32
    %c0_i32_0 = arith.constant 0 : i32
    return %arg0, %c0_i32 : i32, i32
  }
  func.func @transform_1(%arg0: i32) -> (i32, i32) {
    %c0_i32 = arith.constant 0 : i32
    %c0_i32_0 = arith.constant 0 : i32
    return %c0_i32, %arg0 : i32, i32
  }
  func.func @transform_2(%arg0: i32) -> (i32, i32) {
    %c0_i32 = arith.constant 0 : i32
    %c0_i32_0 = arith.constant 0 : i32
    %c0_i32_1 = arith.constant 0 : i32
    return %c0_i32, %c0_i32_0 : i32, i32
  }
  func.func @transform_3(%arg0: i32) -> (i32, i32) {
    %c0_i32 = arith.constant 0 : i32
    %c0_i32_0 = arith.constant 0 : i32
    %c0_i32_1 = arith.constant 0 : i32
    return %c0_i32, %c0_i32_0 : i32, i32
  }
  func.func @transform_4(%arg0: i32) -> (i32, i32) {
    %c0_i32 = arith.constant 0 : i32
    %c0_i32_0 = arith.constant 0 : i32
    return %c0_i32, %arg0 : i32, i32
  }
}

</mosaic_0001>

<llo_original>
// kernel: tpu_custom_call.1
$region0: #{tpu_custom_call.1}
  #allocation0 [shape = 'u32[]', space=smem, size = 0x4, offset = 0x4, fixed_abs, tag = 'smem constant byte address 0x4 - core index']
  #allocation1 [shape = 'u32[144,128]{1,0:T(1,128)}', space=vmem, size = 0x12000, scoped, tag = 'internal scratch']
  #allocation2 [shape = 'f32[1,1]{1,0:T(1,128)S(6)}', space=smem, size = 0x200, scoped, tag = 'scoped memory for tpu_custom_call.1']
  %s0 = inlined_call_operand.vmem [shape: f32[16,100], index: 0, kind: input, shape index: {}]
  %s1 = inlined_call_operand.vmem [shape: f32[1,16], index: 1, kind: input, shape index: {}]
  %s2 = inlined_call_operand.vmem [shape: f32[100,1], index: 2, kind: input, shape index: {}]
  %s3 = inlined_call_operand.<no memory space> [shape: f32[1,1], index: 3, kind: input, shape index: {}]
  %s4 = inlined_call_operand.hbm [shape: f32[5,16], index: 4, kind: output, shape index: {}]
  %s5 = sld [smem:[#allocation0]]
  $region26: #{tpu_custom_call.1} parent=0
    _
  %s7 = ssub.s32 1, %s5
  %s8 = scalar_select 0, %s7, %s5
  %9 = sst [smem:[#allocation2]] %s3
  $region1: #{tpu_custom_call.1} parent=0
    #allocation3 [shape = 'u8[4096]{0}', space=vmem, size = 0x1000, scoped, tag = 'output window, operand 0, single buffered']
    #allocation4 [shape = 's32[1]{0}', space=sflag, size = 0x4, scoped, tag = 'scoped memory for tpu_custom_call.1']
    %10 = vsyncpa [#allocation4], 0
    // Predicated region
    $region2: #{tpu_custom_call.1} parent=1 // pred_check
      _
    $region3: #{tpu_custom_call.1} parent=1 // pred_check_branch
      %12 = sbr.rel (0) target = $region5
    $region4: #{tpu_custom_call.1} parent=1 // pred_region
      _
    $region5: #{tpu_custom_call.1} parent=1 // pred_fallthru
      _
    // Predicated region
    $region6: #{tpu_custom_call.1} parent=1 // pred_check
      _
    $region7: #{tpu_custom_call.1} parent=1 // pred_check_branch
      %14 = sbr.rel (0) target = $region9
    $region8: #{tpu_custom_call.1} parent=1 // pred_region
      _
    $region9: #{tpu_custom_call.1} parent=1 // pred_fallthru
      _
    // Predicated region
    $region10: #{tpu_custom_call.1} parent=1 // pred_check
      _
    $region11: #{tpu_custom_call.1} parent=1 // pred_check_branch
      %16 = sbr.rel (0) target = $region13
    $region12: #{tpu_custom_call.1} parent=1 // pred_region
      _
    $region13: #{tpu_custom_call.1} parent=1 // pred_fallthru
      _
    // Predicated region
    $region14: #{tpu_custom_call.1} parent=1 // pred_check
      _
    $region15: #{tpu_custom_call.1} parent=1 // pred_check_branch
      %18 = sbr.rel (0) target = $region17
    $region16: #{tpu_custom_call.1} parent=1 // pred_region
      _
    $region17: #{tpu_custom_call.1} parent=1 // pred_fallthru
      _
    %v19 = vld [vmem:[%s0] sm:$0xff]
    %v20 = vld [vmem:[%s0 + $0x8] sm:$0xff]
    %v21 = vld [vmem:[%s2] sm:$0xff]
    %v22 = vld [vmem:[%s2 + $0x8] sm:$0xff]
    %v23 = vld [vmem:[%s2 + $0x10] sm:$0xff]
    %v24 = vld [vmem:[%s2 + $0x18] sm:$0xff]
    %v25 = vld [vmem:[%s2 + $0x20] sm:$0xff]
    %v26 = vld [vmem:[%s2 + $0x28] sm:$0xff]
    %v27 = vld [vmem:[%s2 + $0x30] sm:$0xff]
    %v28 = vld [vmem:[%s2 + $0x38] sm:$0xff]
    %v29 = vld [vmem:[%s2 + $0x40] sm:$0xff]
    %v30 = vld [vmem:[%s2 + $0x48] sm:$0xff]
    %v31 = vld [vmem:[%s2 + $0x50] sm:$0xff]
    %v32 = vld [vmem:[%s2 + $0x58] sm:$0xff]
    %v33 = vld [vmem:[%s2 + $0x60] sm:$0xf]
    %s34 = sld [smem:[#allocation2]]
    %v35 = vstv %s34
    %vm36 = vcmask 818176
    %v38 = vsel %vm36, %v19, 0
    %v41 = vsel %vm36, %v20, 0
    %vm43 = vcmask 1043456
    %v45 = vsel %vm43, %v33, 0
    %47 = vmatprep.subr.mxu0 0.0
    %48 = vmatpush1.msra.mxu0 %v21
    %49 = vmatprep.subr.mxu0 0.0
    %50 = vmatpush1.msra.mxu0 %v22
    %51 = vmatprep.subr.mxu0 0.0
    %52 = vmatpush1.msra.mxu0 %v23
    %53 = vmatprep.subr.mxu0 0.0
    %54 = vmatpush1.msra.mxu0 %v24
    %55 = vmatprep.subr.mxu0 0.0
    %56 = vmatpush1.msra.mxu0 %v25
    %57 = vmatprep.subr.mxu0 0.0
    %58 = vmatpush1.msra.mxu0 %v26
    %59 = vmatprep.subr.mxu0 0.0
    %60 = vmatpush1.msra.mxu0 %v27
    %61 = vmatprep.subr.mxu0 0.0
    %62 = vmatpush1.msra.mxu0 %v28
    %63 = vmatprep.subr.mxu0 0.0
    %64 = vmatpush1.msra.mxu0 %v29
    %65 = vmatprep.subr.mxu0 0.0
    %66 = vmatpush1.msra.mxu0 %v30
    %67 = vmatprep.subr.mxu0 0.0
    %68 = vmatpush1.msra.mxu0 %v31
    %69 = vmatprep.subr.mxu0 0.0
    %70 = vmatpush1.msra.mxu0 %v32
    %71 = vmatprep.subr.mxu0 0.0
    %72 = vmatpush1.msra.mxu0 %v45
    %73 = vmatprep.subr.mxu0 0.0
    %74 = vmatpush1.msra.mxu0 0.0
    %75 = vmatprep.subr.mxu0 0.0
    %76 = vmatpush1.msra.mxu0 0.0
    %77 = vmatprep.subr.mxu0 0.0
    %78 = vmatpush1.msra.mxu0 0.0
    %79 = vmatprep.subr.mxu0 0.0
    %80 = vmatpush1.msra.mxu0 0.0
    %81 = vmatprep.subr.mxu0 0.0
    %82 = vmatpush1.msra.mxu0 0.0
    %83 = vmatprep.subr.mxu0 0.0
    %84 = vmatpush1.msra.mxu0 0.0
    %85 = vmatprep.subr.mxu0 0.0
    %86 = vmatpush1.msra.mxu0 0.0
    %87 = vmatprep.subr.mxu0 0.0
    %88 = vmatpush1.msra.mxu0 0.0
    %89 = vmatprep.subr.mxu0 0.0
    %90 = vmatpush1.msra.mxu0 0.0
    %91 = vmatprep.subr.mxu0 0.0
    %92 = vmatpush1.msra.mxu0 0.0
    %93 = vmatprep.subr.mxu0 0.0
    %94 = vmatpush1.msra.mxu0 0.0
    %95 = vmatprep.subr.mxu0 0.0
    %96 = vmatpush1.msra.mxu0 0.0
    %97 = vmatprep.subr.mxu0 0.0
    %98 = vmatpush1.msra.mxu0 0.0
    %99 = vmatprep.subr.mxu0 0.0
    %100 = vmatpush1.msra.mxu0 0.0
    %101 = vmatprep.subr.mxu0 0.0
    %102 = vmatpush1.msra.mxu0 0.0
    %103 = vmatprep.subr.mxu0 0.0
    %104 = vmatpush1.msra.mxu0 0.0
    %105 = vmatprep.subr.mxu0 0.0
    %106 = vmatpush1.msra.mxu0 0.0
    %107 = vmatprep.subr.mxu0 0.0
    %108 = vmatpush1.msra.mxu0 0.0
    %109 = vmatprep.subr.mxu0 0.0
    %110 = vmatpush1.msra.mxu0 0.0
    %111 = vmatprep.mubr.f32.mxu0 0.0
    %112 = vmatmul.mubr.f32.gmra.mrb[0].mxu0 %v38
    %v113 = vpop.f32.mrb[0].mxu0
    %v114 = vadd.f32 %v35, %v113
    %v115 = vpop.f32.mrb[0].mxu0
    %116 = vmatprep.mubr.f32.mxu0 0.0
    %117 = vmatmul.mubr.f32.gmra.mrb[0].mxu0 %v41
    %v118 = vpop.f32.mrb[0].mxu0
    %v119 = vadd.f32 %v35, %v118
    %v120 = vpop.f32.mrb[0].mxu0
    %121 = vdwg.mxu0
    %122 = vxpose.xlu0.b32.start [1/16] %v114, 128
    %123 = vxpose.xlu0.b32.cont [2/16] %v119, 128
    %124 = vxpose.xlu0.b32.cont [3/16] 0.0, 128
    %125 = vxpose.xlu0.b32.cont [4/16] 0.0, 128
    %126 = vxpose.xlu0.b32.cont [5/16] 0.0, 128
    %127 = vxpose.xlu0.b32.cont [6/16] 0.0, 128
    %128 = vxpose.xlu0.b32.cont [7/16] 0.0, 128
    %129 = vxpose.xlu0.b32.cont [8/16] 0.0, 128
    %130 = vxpose.xlu0.b32.cont [9/16] 0.0, 128
    %131 = vxpose.xlu0.b32.cont [10/16] 0.0, 128
    %132 = vxpose.xlu0.b32.cont [11/16] 0.0, 128
    %133 = vxpose.xlu0.b32.cont [12/16] 0.0, 128
    %134 = vxpose.xlu0.b32.cont [13/16] 0.0, 128
    %135 = vxpose.xlu0.b32.cont [14/16] 0.0, 128
    %136 = vxpose.xlu0.b32.cont [15/16] 0.0, 128
    %137 = vxpose.xlu0.b32.end [16/16] 0.0, 128
    %v138 = vpop.trf.xlu0
    %v139 = vpop.trf.xlu0
    %v140 = vpop.trf.xlu0
    %v141 = vpop.trf.xlu0
    %v142 = vpop.trf.xlu0
    %v143 = vpop.trf.xlu0
    %v144 = vpop.trf.xlu0
    %v145 = vpop.trf.xlu0
    %v146 = vpop.trf.xlu0
    %v147 = vpop.trf.xlu0
    %v148 = vpop.trf.xlu0
    %v149 = vpop.trf.xlu0
    %v150 = vpop.trf.xlu0
    %v151 = vpop.trf.xlu0
    %v152 = vpop.trf.xlu0
    %v153 = vpop.trf.xlu0
    %v154 = vsub.f32 0.0, %v138
    %v155 = vmul.f32 %v154, 1.442695
    %v156 = vpow.pop %v155
    %v157 = vadd.f32 %v156, 1.0
    %v158 = vrcp.pop %v157
    %v159 = vmul.f32 1.0, %v158
    %v160 = vmax.f32 %v159, 1e-06
    %v161 = vmin.f32 %v160, 0.999999
    %vm162 = vcmp.ge.f32.partialorder %v161, 0.5
    %v163 = vsel %vm162, 1, 0
    %v164 = vcvt.s32.f32 %v163
    %v165 = vlog2.pop %v161
    %v166 = vmul.f32 %v165, 0.6931472
    %v167 = vsub.f32 1.0, %v161
    %v168 = vlog2.pop %v167
    %v169 = vmul.f32 %v168, 0.6931472
    %v170 = vmul.f32 %v161, %v166
    %v171 = vmul.f32 %v167, %v169
    %v172 = vadd.f32 %v170, %v171
    %v173 = vsub.f32 0.0, %v172
    %v174 = vld [vmem:[%s1] sm:$0x1]
    %vm175 = vcmp.lt.f32.partialorder %v174, %v161
    %v176 = vsel %vm175, 1, 0
    %v177 = vcvt.s32.f32 %v176
    %v178 = vmul.f32 %v177, %v166
    %v179 = vsub.f32 1.0, %v177
    %v180 = vmul.f32 %v179, %v169
    %v181 = vadd.f32 %v178, %v180
    %vm182 = vcmp.eq.f32.partialorder %v164, %v177
    %v183 = vsel %vm182, 1, 0
    %v184 = vcvt.s32.f32 %v183
    %vm185 = vcmask 122880
    %186 = vst.msk [vmem:[#allocation3] sm:$0x1] %vm185, %v161
    %187 = vst.msk [vmem:[#allocation3 + $0x1] sm:$0x1] %vm185, %v181
    %188 = vst.msk [vmem:[#allocation3 + $0x2] sm:$0x1] %vm185, %v177
    %189 = vst.msk [vmem:[#allocation3 + $0x3] sm:$0x1] %vm185, %v184
    %190 = vst.msk [vmem:[#allocation3 + $0x4] sm:$0x1] %vm185, %v173
    // Predicated region
    $region18: #{tpu_custom_call.1} parent=1 // pred_check
      _
    $region19: #{tpu_custom_call.1} parent=1 // pred_check_branch
      %192 = sbr.rel (0) target = $region21
    $region20: #{tpu_custom_call.1} parent=1 // pred_region
      %s194 = ssub.s32 128, 128
      %195 = vsyncadd [#allocation4], %s194
      %s197 = sshll.u32 [#allocation3], 4
      %s198 = int_to_ptr.vmem [resolvable:$true] %s197
      %200 = dma.vmem_to_hbm [thread:$0]  %s198, 128, %s4, [#allocation4]
    $region21: #{tpu_custom_call.1} parent=1 // pred_fallthru
      _
    // Predicated region
    $region22: #{tpu_custom_call.1} parent=1 // pred_check
      _
    $region23: #{tpu_custom_call.1} parent=1 // pred_check_branch
      %202 = sbr.rel (0) target = $region25
    $region24: #{tpu_custom_call.1} parent=1 // pred_region
      %203 = dma.done [#allocation4], 128
    $region25: #{tpu_custom_call.1} parent=1 // pred_fallthru
      _
    %204 = vsyncpa [#allocation4], 1

</llo_original>
